<compile_context>
chip_gen: v5e
topology: v5e:2x2
jax: 0.10.0
libtpu: 0.0.40
codegen_flags: <defaults>
</compile_context>

<pallas_src>
import math

import jax
import jax.numpy as jnp
from jax.experimental import pallas as pl
from jax.experimental.pallas import tpu as pltpu


def hangman_kernel(x_ref, w1_ref, b1_ref, w2_ref, b2_ref, o_ref):
    # fc1: cast activations to bf16 in-kernel (MXU-native), accumulate in f32.
    x = x_ref[...].astype(jnp.bfloat16)
    h = jnp.dot(x, w1_ref[...], preferred_element_type=jnp.float32)
    h = jnp.maximum(h + b1_ref[...], 0.0)
    # fc2: [TB, H_pad](bf16) @ [H_pad, 26](bf16) -> f32, + bias.
    out = jnp.dot(h.astype(jnp.bfloat16), w2_ref[...],
                  preferred_element_type=jnp.float32)
    o_ref[...] = (out + b2_ref[...]).astype(o_ref.dtype)


def _round_up(x, m):
    return ((x + m - 1) // m) * m


def _cdiv(a, b):
    return -(-a // b)


def prepare_params(w1, b1, w2, b2):
    """One-time weight prep: pad hidden dim to 128 and cast matmul weights to bf16.

    w1: [F_in, H], b1: [1, H], w2: [H, A], b2: [1, A]  (all f32, [in, out] layout).
    Returns w1p bf16 [F_in, H_pad], b1p f32 [1, H_pad], w2p bf16 [H_pad, A],
    b2p f32 [1, A].  Zero-padded hidden columns are numerically inert
    (ReLU(0 + 0) = 0, padded w2 rows are 0).
    """
    F_in, H = w1.shape
    A = w2.shape[1]
    H_pad = _round_up(H, 128)

    w1p = jnp.zeros((F_in, H_pad), jnp.bfloat16).at[:, :H].set(
        w1.astype(jnp.bfloat16))
    b1p = jnp.zeros((1, H_pad), jnp.float32).at[:, :H].set(b1.astype(jnp.float32))
    w2p = jnp.zeros((H_pad, A), jnp.bfloat16).at[:H, :].set(
        w2.astype(jnp.bfloat16))
    b2p = b2.astype(jnp.float32).reshape(1, A)
    return w1p, b1p, w2p, b2p


def hangman_forward(x, w1p, b1p, w2p, b2p, *, batch_tile=2048):
    """x: [B, F_in] f32; params from prepare_params. Returns [B, 26] f32."""
    B, F_in = x.shape
    F_in_w, H_pad = w1p.shape
    assert F_in_w == F_in
    A = w2p.shape[1]

    # Batch tile: multiple of 8 sublanes; capped at ~B/2 so there are >= 2
    # independent tiles for medium/large batches (keeps both v7x TCs busy),
    # without over-padding tiny batches.
    TB = min(batch_tile, _round_up(max(_cdiv(B, 2), 1), 8))
    B_pad = _round_up(B, TB)

    # Only pad the batch dim, and only when needed (no feature-dim pad/cast pass).
    xp = x if B_pad == B else jnp.pad(x, ((0, B_pad - B), (0, 0)))

    grid = (B_pad // TB,)

    bytes_accessed = (xp.size * 4            # x read (f32)
                      + w1p.size * 2 + w2p.size * 2   # bf16 weights
                      + b1p.size * 4 + b2p.size * 4   # f32 biases
                      + B_pad * A * 4)       # output write (f32, 26 wide)
    flops = 2 * B_pad * (F_in * H_pad + H_pad * A)

    out = pl.pallas_call(
        hangman_kernel,
        out_shape=jax.ShapeDtypeStruct((B_pad, A), jnp.float32),
        grid=grid,
        in_specs=[
            # x: streamed per batch tile at natural width (double-buffered DMA).
            pl.BlockSpec((TB, F_in), lambda i: (i, 0)),
            # Weights/biases: constant index_map -> fetched once, VMEM-resident.
            pl.BlockSpec((F_in, H_pad), lambda i: (0, 0)),
            pl.BlockSpec((1, H_pad), lambda i: (0, 0)),
            pl.BlockSpec((H_pad, A), lambda i: (0, 0)),
            pl.BlockSpec((1, A), lambda i: (0, 0)),
        ],
        # Lane dim = 26 = full array dim -> legal block; kernel writes only the
        # real alphabet columns (no f32 zero-padding writeback).
        out_specs=pl.BlockSpec((TB, A), lambda i: (i, 0)),
        compiler_params=pltpu.CompilerParams(
            # Independent batch tiles -> shard across TCs on v7x.
            dimension_semantics=("parallel",),
            # Headroom above v5e's 16 MiB scoped default when tiles are large.
            vmem_limit_bytes=32 * 1024 * 1024,
        ),
        cost_estimate=pl.CostEstimate(
            flops=flops, transcendentals=0, bytes_accessed=bytes_accessed),
    )(xp, w1p, b1p, w2p, b2p)

    # Row slice only (cheap); no column slice needed since out is already 26 wide.
    return out if B_pad == B else out[:B]


def init_params(key, num_letters, hidden_size):
    """Deterministic init matching nn.Linear default (uniform +/- 1/sqrt(fan_in)).

    Weights stored as [in, out] (transpose of torch's [out, in]).
    """
    alphabet = 26
    f_in = num_letters * (alphabet + 1)

    k1, k2, k3, k4 = jax.random.split(key, 4)

    bound1 = 1.0 / math.sqrt(f_in)
    w1 = jax.random.uniform(k1, (f_in, hidden_size), jnp.float32, -bound1, bound1)
    b1 = jax.random.uniform(k2, (1, hidden_size), jnp.float32, -bound1, bound1)

    bound2 = 1.0 / math.sqrt(hidden_size)
    w2 = jax.random.uniform(k3, (hidden_size, alphabet), jnp.float32, -bound2, bound2)
    b2 = jax.random.uniform(k4, (1, alphabet), jnp.float32, -bound2, bound2)

    return w1, b1, w2, b2


if __name__ == "__main__":
    key = jax.random.PRNGKey(0)
    k_params, k_x = jax.random.split(key)

    num_letters = 8            # word length -> input dim = 8 * 27 = 216
    hidden_size = 128          # module default
    batch = 2

    w1, b1, w2, b2 = init_params(k_params, num_letters, hidden_size)
    w1p, b1p, w2p, b2p = prepare_params(w1, b1, w2, b2)   # one-time prep
    x = jax.random.normal(k_x, (batch, num_letters * 27), jnp.float32)

    out = hangman_forward(x, w1p, b1p, w2p, b2p)
    out = jax.block_until_ready(out)

    # Reference consistent with the kernel's bf16 matmul inputs / f32 accumulation.
    xb = x.astype(jnp.bfloat16).astype(jnp.float32)
    w1b = w1.astype(jnp.bfloat16).astype(jnp.float32)
    w2b = w2.astype(jnp.bfloat16).astype(jnp.float32)
    h_ref = jnp.maximum(xb @ w1b + b1, 0.0)
    ref = h_ref.astype(jnp.bfloat16).astype(jnp.float32) @ w2b + b2

    assert out.shape == (batch, 26)
    assert jnp.allclose(out, ref, atol=1e-2, rtol=1e-2)

    print("KERNEL_OK")
</pallas_src>

<mosaic_0001>
module attributes {stable_mosaic.version = 11 : i64} {
  func.func @hangman_kernel(%arg0: i32, %arg1: memref<8x216xf32, #tpu.memory_space<vmem>>, %arg2: memref<216x128xbf16, #tpu.memory_space<vmem>>, %arg3: memref<1x128xf32, #tpu.memory_space<vmem>>, %arg4: memref<128x26xbf16, #tpu.memory_space<vmem>>, %arg5: memref<1x26xf32, #tpu.memory_space<vmem>>, %arg6: memref<8x26xf32, #tpu.memory_space<vmem>>) attributes {dimension_semantics = [#tpu.dimension_semantics<parallel>], iteration_bounds = array<i64: 1>, scalar_prefetch = 0 : i64, scratch_operands = 0 : i64, tpu.core_type = #tpu.core_type<tc>, window_params = [{transform_indices = @transform_0, window_bounds = array<i64: 8, 216>}, {pipeline_mode = #tpu.pipeline_mode<synchronous>, transform_indices = @transform_1, window_bounds = array<i64: 216, 128>}, {pipeline_mode = #tpu.pipeline_mode<synchronous>, transform_indices = @transform_2, window_bounds = array<i64: 1, 128>}, {pipeline_mode = #tpu.pipeline_mode<synchronous>, transform_indices = @transform_3, window_bounds = array<i64: 128, 26>}, {pipeline_mode = #tpu.pipeline_mode<synchronous>, transform_indices = @transform_4, window_bounds = array<i64: 1, 26>}, {transform_indices = @transform_5, window_bounds = array<i64: 8, 26>}]} {
    %c0 = arith.constant 0 : index
    %c0_0 = arith.constant 0 : index
    %0 = vector.load %arg1[%c0, %c0_0] : memref<8x216xf32, #tpu.memory_space<vmem>>, vector<8x216xf32>
    %1 = arith.truncf %0 : vector<8x216xf32> to vector<8x216xbf16>
    %c0_1 = arith.constant 0 : index
    %c0_2 = arith.constant 0 : index
    %2 = vector.load %arg2[%c0_1, %c0_2] : memref<216x128xbf16, #tpu.memory_space<vmem>>, vector<216x128xbf16>
    %cst = arith.constant dense<0.000000e+00> : vector<8x128xf32>
    %3 = tpu.matmul %1, %2, %cst {dimension_numbers = #tpu.dot_dimension_numbers<[1], [0], [0], [1], [0, 0, 1, 1], [], []>} : vector<8x216xbf16>, vector<216x128xbf16>, vector<8x128xf32> -> vector<8x128xf32>
    %c0_3 = arith.constant 0 : index
    %c0_4 = arith.constant 0 : index
    %4 = vector.load %arg3[%c0_3, %c0_4] : memref<1x128xf32, #tpu.memory_space<vmem>>, vector<1x128xf32>
    %5 = vector.broadcast %4 : vector<1x128xf32> to vector<8x128xf32>
    %6 = arith.addf %3, %5 : vector<8x128xf32>
    %cst_5 = arith.constant 0.000000e+00 : f32
    %7 = vector.broadcast %cst_5 : f32 to vector<8x128xf32>
    %8 = arith.maximumf %6, %7 : vector<8x128xf32>
    %9 = arith.truncf %8 : vector<8x128xf32> to vector<8x128xbf16>
    %c0_6 = arith.constant 0 : index
    %c0_7 = arith.constant 0 : index
    %10 = vector.load %arg4[%c0_6, %c0_7] : memref<128x26xbf16, #tpu.memory_space<vmem>>, vector<128x26xbf16>
    %cst_8 = arith.constant dense<0.000000e+00> : vector<8x26xf32>
    %11 = tpu.matmul %9, %10, %cst_8 {dimension_numbers = #tpu.dot_dimension_numbers<[1], [0], [0], [1], [0, 0, 1, 1], [], []>} : vector<8x128xbf16>, vector<128x26xbf16>, vector<8x26xf32> -> vector<8x26xf32>
    %c0_9 = arith.constant 0 : index
    %c0_10 = arith.constant 0 : index
    %12 = vector.load %arg5[%c0_9, %c0_10] : memref<1x26xf32, #tpu.memory_space<vmem>>, vector<1x26xf32>
    %13 = vector.broadcast %12 : vector<1x26xf32> to vector<8x26xf32>
    %14 = arith.addf %11, %13 : vector<8x26xf32>
    %c0_11 = arith.constant 0 : index
    %c0_12 = arith.constant 0 : index
    %15 = vector.load %arg6[%c0_11, %c0_12] : memref<8x26xf32, #tpu.memory_space<vmem>>, vector<8x26xf32>
    tpu.vector_store %arg6[%c0_11, %c0_12], %14 {strides = array<i32>} : memref<8x26xf32, #tpu.memory_space<vmem>>, vector<8x26xf32>,
    return
  }
  func.func @transform_0(%arg0: i32) -> (i32, i32) {
    %c0_i32 = arith.constant 0 : i32
    %c0_i32_0 = arith.constant 0 : i32
    return %arg0, %c0_i32 : i32, i32
  }
  func.func @transform_1(%arg0: i32) -> (i32, i32) {
    %c0_i32 = arith.constant 0 : i32
    %c0_i32_0 = arith.constant 0 : i32
    %c0_i32_1 = arith.constant 0 : i32
    return %c0_i32, %c0_i32_0 : i32, i32
  }
  func.func @transform_2(%arg0: i32) -> (i32, i32) {
    %c0_i32 = arith.constant 0 : i32
    %c0_i32_0 = arith.constant 0 : i32
    %c0_i32_1 = arith.constant 0 : i32
    return %c0_i32, %c0_i32_0 : i32, i32
  }
  func.func @transform_3(%arg0: i32) -> (i32, i32) {
    %c0_i32 = arith.constant 0 : i32
    %c0_i32_0 = arith.constant 0 : i32
    %c0_i32_1 = arith.constant 0 : i32
    return %c0_i32, %c0_i32_0 : i32, i32
  }
  func.func @transform_4(%arg0: i32) -> (i32, i32) {
    %c0_i32 = arith.constant 0 : i32
    %c0_i32_0 = arith.constant 0 : i32
    %c0_i32_1 = arith.constant 0 : i32
    return %c0_i32, %c0_i32_0 : i32, i32
  }
  func.func @transform_5(%arg0: i32) -> (i32, i32) {
    %c0_i32 = arith.constant 0 : i32
    %c0_i32_0 = arith.constant 0 : i32
    return %arg0, %c0_i32 : i32, i32
  }
}

</mosaic_0001>

<llo_original>
// kernel: tpu_custom_call.1
$region0: #{tpu_custom_call.1}
  #allocation0 [shape = 'u32[]', space=smem, size = 0x4, offset = 0x4, fixed_abs, tag = 'smem constant byte address 0x4 - core index']
  #allocation1 [shape = 'u32[72,128]{1,0:T(1,128)}', space=vmem, size = 0x9000, scoped, tag = 'internal scratch']
  %s0 = inlined_call_operand.vmem [shape: f32[8,216], index: 0, kind: input, shape index: {}]
  %s1 = inlined_call_operand.hbm [shape: bf16[216,128], index: 1, kind: input, shape index: {}]
  %s2 = inlined_call_operand.vmem [shape: f32[1,128], index: 2, kind: input, shape index: {}]
  %s3 = inlined_call_operand.vmem [shape: bf16[128,26], index: 3, kind: input, shape index: {}]
  %s4 = inlined_call_operand.vmem [shape: f32[1,26], index: 4, kind: input, shape index: {}]
  %s5 = inlined_call_operand.hbm [shape: f32[8,26], index: 5, kind: output, shape index: {}]
  %s6 = sld [smem:[#allocation0]]
  $region34: #{tpu_custom_call.1} parent=0
    _
  %s8 = ssub.s32 1, %s6
  %s9 = scalar_select 0, %s8, %s6
  $region1: #{tpu_custom_call.1} parent=0
    #allocation2 [shape = 'u8[55296]{0}', space=vmem, size = 0xd800, scoped, tag = 'input window, operand 1, single buffered']
    #allocation3 [shape = 's32[1]{0}', space=sflag, size = 0x4, scoped, tag = 'scoped memory for tpu_custom_call.1']
    #allocation4 [shape = 's32[1]{0}', space=sflag, size = 0x4, scoped, tag = 'scoped memory for tpu_custom_call.1']
    #allocation5 [shape = 'u8[4096]{0}', space=vmem, size = 0x1000, scoped, tag = 'output window, operand 0, single buffered']
    %10 = vsyncpa [#allocation3], 0
    %11 = vsyncpa [#allocation4], 0
    // Predicated region
    $region2: #{tpu_custom_call.1} parent=1 // pred_check
      _
    $region3: #{tpu_custom_call.1} parent=1 // pred_check_branch
      %13 = sbr.rel (0) target = $region5
    $region4: #{tpu_custom_call.1} parent=1 // pred_region
      _
    $region5: #{tpu_custom_call.1} parent=1 // pred_fallthru
      _
    // Predicated region
    $region6: #{tpu_custom_call.1} parent=1 // pred_check
      _
    $region7: #{tpu_custom_call.1} parent=1 // pred_check_branch
      %15 = sbr.rel (0) target = $region9
    $region8: #{tpu_custom_call.1} parent=1 // pred_region
      %17 = vsyncadd [#allocation3], 0
      %s18 = sshll.u32 %s1, 4
      %s19 = int_to_ptr.hbm [resolvable:$true] %s18
      %s20 = sshll.u32 [#allocation2], 4
      %s21 = int_to_ptr.vmem [resolvable:$true] %s20
      %26 = dma.hbm_to_vmem [thread:$0]  %s19, 1728, %s21, [#allocation3], 64, 64, 4
    $region9: #{tpu_custom_call.1} parent=1 // pred_fallthru
      _
    // Predicated region
    $region10: #{tpu_custom_call.1} parent=1 // pred_check
      _
    $region11: #{tpu_custom_call.1} parent=1 // pred_check_branch
      %28 = sbr.rel (0) target = $region13
    $region12: #{tpu_custom_call.1} parent=1 // pred_region
      _
    $region13: #{tpu_custom_call.1} parent=1 // pred_fallthru
      _
    // Predicated region
    $region14: #{tpu_custom_call.1} parent=1 // pred_check
      _
    $region15: #{tpu_custom_call.1} parent=1 // pred_check_branch
      %30 = sbr.rel (0) target = $region17
    $region16: #{tpu_custom_call.1} parent=1 // pred_region
      _
    $region17: #{tpu_custom_call.1} parent=1 // pred_fallthru
      _
    // Predicated region
    $region18: #{tpu_custom_call.1} parent=1 // pred_check
      _
    $region19: #{tpu_custom_call.1} parent=1 // pred_check_branch
      %32 = sbr.rel (0) target = $region21
    $region20: #{tpu_custom_call.1} parent=1 // pred_region
      _
    $region21: #{tpu_custom_call.1} parent=1 // pred_fallthru
      _
    // Predicated region
    $region22: #{tpu_custom_call.1} parent=1 // pred_check
      _
    $region23: #{tpu_custom_call.1} parent=1 // pred_check_branch
      %34 = sbr.rel (0) target = $region25
    $region24: #{tpu_custom_call.1} parent=1 // pred_region
      %36 = dma.done [#allocation3], 1728
    $region25: #{tpu_custom_call.1} parent=1 // pred_fallthru
      _
    %v38 = vld [vmem:[%s0] sm:$0xff]
    %v39 = vld [vmem:[%s0 + $0x8] sm:$0xff]
    %v40 = vpack.c.bf16 %v38, %v38
    %v41 = vpack.c.bf16 %v39, %v39
    %v42 = vld [vmem:[#allocation2] sm:$0xf]
    %v43 = vld [vmem:[#allocation2 + $0x4] sm:$0xf]
    %v44 = vld [vmem:[#allocation2 + $0x8] sm:$0xf]
    %v45 = vld [vmem:[#allocation2 + $0xc] sm:$0xf]
    %v46 = vld [vmem:[#allocation2 + $0x10] sm:$0xf]
    %v47 = vld [vmem:[#allocation2 + $0x14] sm:$0xf]
    %v48 = vld [vmem:[#allocation2 + $0x18] sm:$0xf]
    %v49 = vld [vmem:[#allocation2 + $0x1c] sm:$0xf]
    %v50 = vld [vmem:[#allocation2 + $0x20] sm:$0xf]
    %v51 = vld [vmem:[#allocation2 + $0x24] sm:$0xf]
    %v52 = vld [vmem:[#allocation2 + $0x28] sm:$0xf]
    %v53 = vld [vmem:[#allocation2 + $0x2c] sm:$0xf]
    %v54 = vld [vmem:[#allocation2 + $0x30] sm:$0xf]
    %v55 = vld [vmem:[#allocation2 + $0x34] sm:$0xf]
    %v56 = vld [vmem:[#allocation2 + $0x38] sm:$0xf]
    %v57 = vld [vmem:[#allocation2 + $0x3c] sm:$0xf]
    %v58 = vld [vmem:[#allocation2 + $0x40] sm:$0xf]
    %v59 = vld [vmem:[#allocation2 + $0x44] sm:$0xf]
    %v60 = vld [vmem:[#allocation2 + $0x48] sm:$0xf]
    %v61 = vld [vmem:[#allocation2 + $0x4c] sm:$0xf]
    %v62 = vld [vmem:[#allocation2 + $0x50] sm:$0xf]
    %v63 = vld [vmem:[#allocation2 + $0x54] sm:$0xf]
    %v64 = vld [vmem:[#allocation2 + $0x58] sm:$0xf]
    %v65 = vld [vmem:[#allocation2 + $0x5c] sm:$0xf]
    %v66 = vld [vmem:[#allocation2 + $0x60] sm:$0xf]
    %v67 = vld [vmem:[#allocation2 + $0x64] sm:$0xf]
    %v68 = vld [vmem:[#allocation2 + $0x68] sm:$0xf]
    %v69 = vld [vmem:[%s2] sm:$0x1]
    %v71 = vperm.slane %v69, 0
    %v100 = vunpack.c.l.b16 %v42
    %v101 = vunpack.c.l.b16 %v43
    %v102 = vunpack.c.l.b16 %v44
    %v103 = vunpack.c.l.b16 %v45
    %v104 = vunpack.c.l.b16 %v46
    %v105 = vunpack.c.l.b16 %v47
    %v106 = vunpack.c.l.b16 %v48
    %v107 = vunpack.c.l.b16 %v49
    %v108 = vunpack.c.l.b16 %v50
    %v109 = vunpack.c.l.b16 %v51
    %v110 = vunpack.c.l.b16 %v52
    %v111 = vunpack.c.l.b16 %v53
    %v112 = vunpack.c.l.b16 %v54
    %v113 = vunpack.c.l.b16 %v55
    %v114 = vunpack.c.l.b16 %v56
    %v115 = vunpack.c.l.b16 %v57
    %v116 = vunpack.c.l.b16 %v58
    %v117 = vunpack.c.l.b16 %v59
    %v118 = vunpack.c.l.b16 %v60
    %v119 = vunpack.c.l.b16 %v61
    %v120 = vunpack.c.l.b16 %v62
    %v121 = vunpack.c.l.b16 %v63
    %v122 = vunpack.c.l.b16 %v64
    %v123 = vunpack.c.l.b16 %v65
    %v124 = vunpack.c.l.b16 %v66
    %v125 = vunpack.c.l.b16 %v67
    %v126 = vunpack.c.l.b16 %v68
    %v127 = vpack.c.b16 %v101, %v100
    %v128 = vpack.c.b16 %v103, %v102
    %v129 = vpack.c.b16 %v105, %v104
    %v130 = vpack.c.b16 %v107, %v106
    %v131 = vpack.c.b16 %v109, %v108
    %v132 = vpack.c.b16 %v111, %v110
    %v133 = vpack.c.b16 %v113, %v112
    %v134 = vpack.c.b16 %v115, %v114
    %v135 = vpack.c.b16 %v117, %v116
    %v136 = vpack.c.b16 %v119, %v118
    %v137 = vpack.c.b16 %v121, %v120
    %v138 = vpack.c.b16 %v123, %v122
    %v139 = vpack.c.b16 %v125, %v124
    %v140 = vpack.c.b16 %v126, %v126
    %vm154 = vcmask 719872
    %v156 = vsel %vm154, %v41, 0
    %vm158 = vcmask 1043456
    %v160 = vsel %vm158, %v140, 0
    %162 = vmatpush.bf16.msra.mxu0 %v134
    %163 = vmatpush.bf16.msra.mxu0 %v133
    %164 = vmatpush.bf16.msra.mxu0 %v132
    %165 = vmatpush.bf16.msra.mxu0 %v131
    %166 = vmatpush.bf16.msra.mxu0 %v130
    %167 = vmatpush.bf16.msra.mxu0 %v129
    %168 = vmatpush.bf16.msra.mxu0 %v128
    %169 = vmatpush.bf16.msra.mxu0 %v127
    %170 = vmatmul.bf16.gmra.mxu0 %v40
    %v171 = vpop.f32.mrf.mxu0
    %v172 = vadd.f32 %v71, %v171
    %v173 = vpop.f32.mrf.mxu0
    %174 = vdwg.mxu0
    %175 = vmatpush.bf16.msra.mxu0 0
    %176 = vmatpush.bf16.msra.mxu0 0
    %177 = vmatpush.bf16.msra.mxu0 %v160
    %178 = vmatpush.bf16.msra.mxu0 %v139
    %179 = vmatpush.bf16.msra.mxu0 %v138
    %180 = vmatpush.bf16.msra.mxu0 %v137
    %181 = vmatpush.bf16.msra.mxu0 %v136
    %182 = vmatpush.bf16.msra.mxu0 %v135
    %183 = vmatmul.bf16.gmra.mxu0 %v156
    %v184 = vpop.f32.mrf.mxu0
    %v185 = vadd.f32 %v172, %v184
    %v186 = vpop.f32.mrf.mxu0
    %187 = vdwg.mxu0
    %v188 = vmax.f32 %v185, 0.0
    %v189 = vpack.c.bf16 %v188, %v188
    %v190 = vld [vmem:[%s3] sm:$0xf]
    %v191 = vld [vmem:[%s3 + $0x4] sm:$0xf]
    %v192 = vld [vmem:[%s3 + $0x8] sm:$0xf]
    %v193 = vld [vmem:[%s3 + $0xc] sm:$0xf]
    %v194 = vld [vmem:[%s3 + $0x10] sm:$0xf]
    %v195 = vld [vmem:[%s3 + $0x14] sm:$0xf]
    %v196 = vld [vmem:[%s3 + $0x18] sm:$0xf]
    %v197 = vld [vmem:[%s3 + $0x1c] sm:$0xf]
    %v198 = vld [vmem:[%s3 + $0x20] sm:$0xf]
    %v199 = vld [vmem:[%s3 + $0x24] sm:$0xf]
    %v200 = vld [vmem:[%s3 + $0x28] sm:$0xf]
    %v201 = vld [vmem:[%s3 + $0x2c] sm:$0xf]
    %v202 = vld [vmem:[%s3 + $0x30] sm:$0xf]
    %v203 = vld [vmem:[%s3 + $0x34] sm:$0xf]
    %v204 = vld [vmem:[%s3 + $0x38] sm:$0xf]
    %v205 = vld [vmem:[%s3 + $0x3c] sm:$0xf]
    %v206 = vld [vmem:[%s4] sm:$0x1]
    %v208 = vperm.slane %v206, 0
    %v226 = vunpack.c.l.b16 %v190
    %v227 = vunpack.c.l.b16 %v191
    %v228 = vunpack.c.l.b16 %v192
    %v229 = vunpack.c.l.b16 %v193
    %v230 = vunpack.c.l.b16 %v194
    %v231 = vunpack.c.l.b16 %v195
    %v232 = vunpack.c.l.b16 %v196
    %v233 = vunpack.c.l.b16 %v197
    %v234 = vunpack.c.l.b16 %v198
    %v235 = vunpack.c.l.b16 %v199
    %v236 = vunpack.c.l.b16 %v200
    %v237 = vunpack.c.l.b16 %v201
    %v238 = vunpack.c.l.b16 %v202
    %v239 = vunpack.c.l.b16 %v203
    %v240 = vunpack.c.l.b16 %v204
    %v241 = vunpack.c.l.b16 %v205
    %v242 = vpack.c.b16 %v227, %v226
    %v243 = vpack.c.b16 %v229, %v228
    %v244 = vpack.c.b16 %v231, %v230
    %v245 = vpack.c.b16 %v233, %v232
    %v246 = vpack.c.b16 %v235, %v234
    %v247 = vpack.c.b16 %v237, %v236
    %v248 = vpack.c.b16 %v239, %v238
    %v249 = vpack.c.b16 %v241, %v240
    %258 = vmatpush.bf16.msra.mxu0 %v249
    %259 = vmatpush.bf16.msra.mxu0 %v248
    %260 = vmatpush.bf16.msra.mxu0 %v247
    %261 = vmatpush.bf16.msra.mxu0 %v246
    %262 = vmatpush.bf16.msra.mxu0 %v245
    %263 = vmatpush.bf16.msra.mxu0 %v244
    %264 = vmatpush.bf16.msra.mxu0 %v243
    %265 = vmatpush.bf16.msra.mxu0 %v242
    %266 = vmatmul.bf16.gmra.mxu0 %v189
    %v267 = vpop.f32.mrf.mxu0
    %v268 = vadd.f32 %v208, %v267
    %v269 = vpop.f32.mrf.mxu0
    %270 = vdwg.mxu0
    %vm271 = vcmask 211968
    %272 = vst.msk [vmem:[#allocation5] sm:$0xff] %vm271, %v268
    // Predicated region
    $region26: #{tpu_custom_call.1} parent=1 // pred_check
      _
    $region27: #{tpu_custom_call.1} parent=1 // pred_check_branch
      %274 = sbr.rel (0) target = $region29
    $region28: #{tpu_custom_call.1} parent=1 // pred_region
      %276 = vsyncadd [#allocation4], 0
      %s278 = sshll.u32 [#allocation5], 4
      %s279 = int_to_ptr.vmem [resolvable:$true] %s278
      %s280 = sshll.u32 %s5, 4
      %s281 = int_to_ptr.hbm [resolvable:$true] %s280
      %283 = dma.vmem_to_hbm [thread:$0]  %s279, 128, %s281, [#allocation4]
    $region29: #{tpu_custom_call.1} parent=1 // pred_fallthru
      _
    // Predicated region
    $region30: #{tpu_custom_call.1} parent=1 // pred_check
      _
    $region31: #{tpu_custom_call.1} parent=1 // pred_check_branch
      %285 = sbr.rel (0) target = $region33
    $region32: #{tpu_custom_call.1} parent=1 // pred_region
      %287 = dma.done [#allocation4], 128
    $region33: #{tpu_custom_call.1} parent=1 // pred_fallthru
      _
    %288 = vsyncpa [#allocation3], 1
    %289 = vsyncpa [#allocation4], 1

</llo_original>
